<compile_context>
chip_gen: v7x
topology: tpu7x:2x2x1
jax: 0.10.0
libtpu: 0.0.40
codegen_flags: <defaults>
</compile_context>

<pallas_src>
import functools

import jax
import jax.numpy as jnp
from jax.experimental import pallas as pl
from jax.experimental.pallas import tpu as pltpu


def _filblock_kernel(a_rows_ref, a_cols_ref, w1_ref, w2_ref, te_ref, bias_ref, o_ref):
    """One batch tile (TB elements) per grid step.

    a_rows_ref : (1, K, TB*d) bf16   rows ci*d + h, lanes t*d + w
    a_cols_ref : (1, K, TB*d) bf16   rows ci*d + w, lanes t*d + h
    w1_ref     : (Cout, K)    bf16   flattened conv1xd weight  [co, ci*d + kh]
    w2_ref     : (Cout, K)    bf16   flattened convdx1 weight  [co, ci*d + kw]
    te_ref     : (2d, d*d)    f32    constant 0/1 expansion: [w-rows | h-rows] -> (h*d + w)
    bias_ref   : (Cout, 1)    f32    combined bias b1 + b2
    o_ref      : (TB, Cout, d*d) f32 output tile (free trailing reshape to NCHW outside)
    """
    tb = o_ref.shape[0]
    d = te_ref.shape[0] // 2

    # Wide, lane-dense MXU contractions over K = Cin*d (replace both convolutions).
    t1 = jnp.dot(w1_ref[...], a_rows_ref[0],
                 preferred_element_type=jnp.float32)          # (Cout, TB*d)  lanes (t, w)
    t2 = jnp.dot(w2_ref[...], a_cols_ref[0],
                 preferred_element_type=jnp.float32)          # (Cout, TB*d)  lanes (t, h)

    te = te_ref[...]
    bias = bias_ref[...]

    # Per batch element: expand the two (Cout, d) vectors to (Cout, d*d) with one
    # small MXU matmul against the constant 0/1 matrix (exact in f32), then store
    # 256 dense lanes.  TB is small, so a static unroll keeps the LLO scheduler happy.
    for t in range(tb):
        lo = t * d
        hcat = jnp.concatenate([t1[:, lo:lo + d], t2[:, lo:lo + d]], axis=1)   # (Cout, 2d)
        o_ref[t] = jnp.dot(hcat, te, preferred_element_type=jnp.float32) + bias


def filblock_forward(A, w1, b1, w2, b2, *, in_channel, nodes, batch_tile=32):
    """A: anything reshapeable to (B, in_channel, nodes, nodes) (like A.view in torch).
    w1: (Cout, Cin, d, 1)  b1: (Cout,)   -- conv1xd parameters
    w2: (Cout, Cin, 1, d)  b2: (Cout,)   -- convdx1 parameters
    Returns (B, Cout, d, d) float32, matching the PyTorch module output.
    """
    d = nodes
    cin = in_channel
    A4 = jnp.asarray(A, jnp.float32).reshape(-1, cin, d, d)     # A.view(-1, Cin, d, d)
    B = A4.shape[0]
    cout = w1.shape[0]
    K = cin * d

    # Batch tile: big enough to amortize per-step overhead and fill lanes, but keep
    # >= 2 grid steps when B >= 2 so v7x can split the parallel axis over both TCs.
    tb = max(1, min(batch_tile, (B + 1) // 2)) if B > 1 else 1
    nb = pl.cdiv(B, tb)
    Bp = nb * tb
    if Bp != B:
        A4 = jnp.pad(A4, ((0, Bp - B), (0, 0), (0, 0), (0, 0)))

    # bf16 operands (f32 accumulation inside the kernel) halve input HBM/VMEM traffic.
    a5 = A4.astype(jnp.bfloat16).reshape(nb, tb, cin, d, d)
    # Row view:    a_rows[n, ci*d + h, t*d + w] = A[n*tb + t, ci, h, w]
    a_rows = jnp.transpose(a5, (0, 2, 3, 1, 4)).reshape(nb, K, tb * d)
    # Column view: a_cols[n, ci*d + w, t*d + h] = A[n*tb + t, ci, h, w]
    a_cols = jnp.transpose(a5, (0, 2, 4, 1, 3)).reshape(nb, K, tb * d)

    w1f = jnp.asarray(w1, jnp.float32)[:, :, :, 0].reshape(cout, K).astype(jnp.bfloat16)
    w2f = jnp.asarray(w2, jnp.float32)[:, :, 0, :].reshape(cout, K).astype(jnp.bfloat16)
    bias = (jnp.asarray(b1, jnp.float32) + jnp.asarray(b2, jnp.float32)).reshape(cout, 1)

    # Constant 0/1 expansion matrix TE (2d, d*d):  out[co, h*d+w] = t1[co, w] + t2[co, h]
    # == [t1 | t2] @ TE.  (Loaded once: constant index_map -> no re-DMA across steps.)
    col = jnp.arange(d * d, dtype=jnp.int32)
    row = jnp.arange(d, dtype=jnp.int32)
    t_top = (col[None, :] % d == row[:, None]).astype(jnp.float32)    # selects w
    t_bot = (col[None, :] // d == row[:, None]).astype(jnp.float32)   # selects h
    te = jnp.concatenate([t_top, t_bot], axis=0)                      # (2d, d*d)

    out = pl.pallas_call(
        _filblock_kernel,
        out_shape=jax.ShapeDtypeStruct((Bp, cout, d * d), jnp.float32),
        grid=(nb,),
        in_specs=[
            pl.BlockSpec((1, K, tb * d), lambda i: (i, 0, 0)),
            pl.BlockSpec((1, K, tb * d), lambda i: (i, 0, 0)),
            pl.BlockSpec((cout, K), lambda i: (0, 0)),
            pl.BlockSpec((cout, K), lambda i: (0, 0)),
            pl.BlockSpec((2 * d, d * d), lambda i: (0, 0)),
            pl.BlockSpec((cout, 1), lambda i: (0, 0)),
        ],
        out_specs=pl.BlockSpec((tb, cout, d * d), lambda i: (i, 0, 0)),
        compiler_params=pltpu.CompilerParams(
            dimension_semantics=("parallel",),   # batch tiles are independent (v7x 2-TC)
        ),
    )(a_rows, a_cols, w1f, w2f, te, bias)

    # Trailing-dim reshape back to NCHW is free (contiguous); drop any batch padding.
    return out[:B].reshape(B, cout, d, d)


# ---------------- pure-JAX reference (sanity check only) ----------------
def _ref_forward(A, w1, b1, w2, b2, *, in_channel, nodes):
    d = nodes
    A4 = jnp.asarray(A, jnp.float32).reshape(-1, in_channel, d, d)
    dn = ("NCHW", "OIHW", "NCHW")
    y1 = jax.lax.conv_general_dilated(A4, jnp.asarray(w1, jnp.float32), (1, 1), "VALID",
                                      dimension_numbers=dn) + b1[None, :, None, None]
    y2 = jax.lax.conv_general_dilated(A4, jnp.asarray(w2, jnp.float32), (1, 1), "VALID",
                                      dimension_numbers=dn) + b2[None, :, None, None]
    return jnp.concatenate([y1] * d, axis=2) + jnp.concatenate([y2] * d, axis=3)


if __name__ == "__main__":
    key = jax.random.PRNGKey(0)

    batch = 2
    in_channel = 4
    out_channel = 32
    nodes = 16                      # input_shape[0] == d == spatial size

    key, ka, kw1, kb1, kw2, kb2 = jax.random.split(key, 6)
    A = jax.random.normal(ka, (batch, in_channel, nodes, nodes), jnp.float32)
    w1 = jax.random.normal(kw1, (out_channel, in_channel, nodes, 1), jnp.float32) * 0.125
    b1 = jax.random.normal(kb1, (out_channel,), jnp.float32) * 0.1
    w2 = jax.random.normal(kw2, (out_channel, in_channel, 1, nodes), jnp.float32) * 0.125
    b2 = jax.random.normal(kb2, (out_channel,), jnp.float32) * 0.1

    fwd = jax.jit(functools.partial(filblock_forward, in_channel=in_channel, nodes=nodes))
    out = jax.block_until_ready(fwd(A, w1, b1, w2, b2))

    ref = _ref_forward(A, w1, b1, w2, b2, in_channel=in_channel, nodes=nodes)
    assert out.shape == (batch, out_channel, nodes, nodes), out.shape
    max_err = float(jnp.max(jnp.abs(out - ref)))
    # bf16 operands (f32 accumulation) vs the f32 torch-style reference -> small delta.
    assert jnp.allclose(out, ref, atol=8e-2, rtol=8e-2), f"max_err={max_err}"

    print("KERNEL_OK")
</pallas_src>

<mosaic_0001>
module attributes {stable_mosaic.version = 11 : i64} {
  func.func @_filblock_kernel(%arg0: i32, %arg1: memref<1x64x16xbf16, #tpu.memory_space<vmem>>, %arg2: memref<1x64x16xbf16, #tpu.memory_space<vmem>>, %arg3: memref<32x64xbf16, #tpu.memory_space<vmem>>, %arg4: memref<32x64xbf16, #tpu.memory_space<vmem>>, %arg5: memref<32x256xf32, #tpu.memory_space<vmem>>, %arg6: memref<32x1xf32, #tpu.memory_space<vmem>>, %arg7: memref<1x32x256xf32, #tpu.memory_space<vmem>>) attributes {dimension_semantics = [#tpu.dimension_semantics<parallel>], iteration_bounds = array<i64: 2>, scalar_prefetch = 0 : i64, scratch_operands = 0 : i64, tpu.core_type = #tpu.core_type<tc>, window_params = [{transform_indices = @transform_0, window_bounds = array<i64: 1, 64, 16>}, {transform_indices = @transform_1, window_bounds = array<i64: 1, 64, 16>}, {pipeline_mode = #tpu.pipeline_mode<synchronous>, transform_indices = @transform_2, window_bounds = array<i64: 32, 64>}, {pipeline_mode = #tpu.pipeline_mode<synchronous>, transform_indices = @transform_3, window_bounds = array<i64: 32, 64>}, {pipeline_mode = #tpu.pipeline_mode<synchronous>, transform_indices = @transform_4, window_bounds = array<i64: 32, 256>}, {pipeline_mode = #tpu.pipeline_mode<synchronous>, transform_indices = @transform_5, window_bounds = array<i64: 32, 1>}, {transform_indices = @transform_6, window_bounds = array<i64: 1, 32, 256>}]} {
    %c0 = arith.constant 0 : index
    %c0_0 = arith.constant 0 : index
    %0 = vector.load %arg3[%c0, %c0_0] : memref<32x64xbf16, #tpu.memory_space<vmem>>, vector<32x64xbf16>
    %c0_1 = arith.constant 0 : index
    %c0_2 = arith.constant 0 : index
    %c0_3 = arith.constant 0 : index
    %1 = vector.load %arg1[%c0_1, %c0_2, %c0_3] : memref<1x64x16xbf16, #tpu.memory_space<vmem>>, vector<1x64x16xbf16>
    %2 = vector.shape_cast %1 : vector<1x64x16xbf16> to vector<64x16xbf16>
    %cst = arith.constant dense<0.000000e+00> : vector<32x16xf32>
    %3 = tpu.matmul %0, %2, %cst {dimension_numbers = #tpu.dot_dimension_numbers<[1], [0], [0], [1], [0, 0, 1, 1], [], []>} : vector<32x64xbf16>, vector<64x16xbf16>, vector<32x16xf32> -> vector<32x16xf32>
    %c0_4 = arith.constant 0 : index
    %c0_5 = arith.constant 0 : index
    %4 = vector.load %arg4[%c0_4, %c0_5] : memref<32x64xbf16, #tpu.memory_space<vmem>>, vector<32x64xbf16>
    %c0_6 = arith.constant 0 : index
    %c0_7 = arith.constant 0 : index
    %c0_8 = arith.constant 0 : index
    %5 = vector.load %arg2[%c0_6, %c0_7, %c0_8] : memref<1x64x16xbf16, #tpu.memory_space<vmem>>, vector<1x64x16xbf16>
    %6 = vector.shape_cast %5 : vector<1x64x16xbf16> to vector<64x16xbf16>
    %cst_9 = arith.constant dense<0.000000e+00> : vector<32x16xf32>
    %7 = tpu.matmul %4, %6, %cst_9 {dimension_numbers = #tpu.dot_dimension_numbers<[1], [0], [0], [1], [0, 0, 1, 1], [], []>} : vector<32x64xbf16>, vector<64x16xbf16>, vector<32x16xf32> -> vector<32x16xf32>
    %c0_10 = arith.constant 0 : index
    %c0_11 = arith.constant 0 : index
    %8 = vector.load %arg5[%c0_10, %c0_11] : memref<32x256xf32, #tpu.memory_space<vmem>>, vector<32x256xf32>
    %c0_12 = arith.constant 0 : index
    %c0_13 = arith.constant 0 : index
    %9 = vector.load %arg6[%c0_12, %c0_13] : memref<32x1xf32, #tpu.memory_space<vmem>>, vector<32x1xf32>
    %10 = tpu.concatenate %3, %7 in 1 : vector<32x16xf32>, vector<32x16xf32> -> vector<32x32xf32>
    %cst_14 = arith.constant dense<0.000000e+00> : vector<32x256xf32>
    %11 = tpu.matmul %10, %8, %cst_14 {dimension_numbers = #tpu.dot_dimension_numbers<[1], [0], [0], [1], [0, 0, 1, 1], [], []>} : vector<32x32xf32>, vector<32x256xf32>, vector<32x256xf32> -> vector<32x256xf32>
    %12 = vector.broadcast %9 : vector<32x1xf32> to vector<32x256xf32>
    %13 = arith.addf %11, %12 : vector<32x256xf32>
    %c0_15 = arith.constant 0 : index
    %c0_16 = arith.constant 0 : index
    %c0_17 = arith.constant 0 : index
    %14 = vector.load %arg7[%c0_15, %c0_16, %c0_17] : memref<1x32x256xf32, #tpu.memory_space<vmem>>, vector<1x32x256xf32>
    %15 = vector.shape_cast %14 : vector<1x32x256xf32> to vector<32x256xf32>
    %16 = vector.shape_cast %13 : vector<32x256xf32> to vector<1x32x256xf32>
    tpu.vector_store %arg7[%c0_15, %c0_16, %c0_17], %16 {strides = array<i32>} : memref<1x32x256xf32, #tpu.memory_space<vmem>>, vector<1x32x256xf32>,
    return
  }
  func.func @transform_0(%arg0: i32) -> (i32, i32, i32) {
    %c0_i32 = arith.constant 0 : i32
    %c0_i32_0 = arith.constant 0 : i32
    %c0_i32_1 = arith.constant 0 : i32
    return %arg0, %c0_i32, %c0_i32_0 : i32, i32, i32
  }
  func.func @transform_1(%arg0: i32) -> (i32, i32, i32) {
    %c0_i32 = arith.constant 0 : i32
    %c0_i32_0 = arith.constant 0 : i32
    %c0_i32_1 = arith.constant 0 : i32
    return %arg0, %c0_i32, %c0_i32_0 : i32, i32, i32
  }
  func.func @transform_2(%arg0: i32) -> (i32, i32) {
    %c0_i32 = arith.constant 0 : i32
    %c0_i32_0 = arith.constant 0 : i32
    %c0_i32_1 = arith.constant 0 : i32
    return %c0_i32, %c0_i32_0 : i32, i32
  }
  func.func @transform_3(%arg0: i32) -> (i32, i32) {
    %c0_i32 = arith.constant 0 : i32
    %c0_i32_0 = arith.constant 0 : i32
    %c0_i32_1 = arith.constant 0 : i32
    return %c0_i32, %c0_i32_0 : i32, i32
  }
  func.func @transform_4(%arg0: i32) -> (i32, i32) {
    %c0_i32 = arith.constant 0 : i32
    %c0_i32_0 = arith.constant 0 : i32
    %c0_i32_1 = arith.constant 0 : i32
    return %c0_i32, %c0_i32_0 : i32, i32
  }
  func.func @transform_5(%arg0: i32) -> (i32, i32) {
    %c0_i32 = arith.constant 0 : i32
    %c0_i32_0 = arith.constant 0 : i32
    %c0_i32_1 = arith.constant 0 : i32
    return %c0_i32, %c0_i32_0 : i32, i32
  }
  func.func @transform_6(%arg0: i32) -> (i32, i32, i32) {
    %c0_i32 = arith.constant 0 : i32
    %c0_i32_0 = arith.constant 0 : i32
    %c0_i32_1 = arith.constant 0 : i32
    return %arg0, %c0_i32, %c0_i32_0 : i32, i32, i32
  }
}

</mosaic_0001>

<llo_original>
// kernel: filblock_forward.1
$region0: #{filblock_forward.1}
  #allocation0 [shape = 'u32[]', space=smem, size = 0x4, offset = 0x4, fixed_abs, tag = 'smem constant byte address 0x4 - core index']
  #allocation1 [shape = 'u32[144,128]{1,0:T(1,128)}', space=vmem, size = 0x12000, scoped, tag = 'internal scratch']
  %s0 = inlined_call_operand.vmem [shape: bf16[2,64,16], index: 0, kind: input, shape index: {}]
  %s1 = inlined_call_operand.vmem [shape: bf16[2,64,16], index: 1, kind: input, shape index: {}]
  %s2 = inlined_call_operand.vmem [shape: bf16[32,64], index: 2, kind: input, shape index: {}]
  %s3 = inlined_call_operand.vmem [shape: bf16[32,64], index: 3, kind: input, shape index: {}]
  %s4 = inlined_call_operand.vmem [shape: f32[32,256], index: 4, kind: input, shape index: {}]
  %s5 = inlined_call_operand.vmem [shape: f32[32,1], index: 5, kind: input, shape index: {}]
  %s6 = inlined_call_operand.vmem [shape: f32[2,32,256], index: 6, kind: output, shape index: {}]
  %s7 = sld [smem:[#allocation0]]
  $region57: #{filblock_forward.1} parent=0
    _
  %s9 = ssub.s32 1, %s7
  %s10 = scalar_select 0, %s9, %s7
  loop: start=0, step=1, limit=4
  $region2: #{filblock_forward.1} parent=0 // loop_pre_header
    _
  $region3: #{filblock_forward.1} parent=0 // loop_header
    %s12 = sphi 0, %s16
    %p13 = scmp.ge.s32.totalorder %s12, 4
    %s22 = sphi 0, %s24
    %s25 = sphi 0, %s22
    %s26 = sphi 0, %s25
    %s42 = sphi 0, %s26
    %s48 = sphi 0, %s50
    %s51 = sphi 0, %s48
    %s52 = sphi 0, %s51
    %s68 = sphi 0, %s52
    %s72 = sphi 0, %s72
    %s74 = sphi 0, %s72
    %s75 = sphi 0, %s74
    %s89 = sphi 0, %s75
    %s93 = sphi 0, %s93
    %s95 = sphi 0, %s93
    %s96 = sphi 0, %s95
    %s110 = sphi 0, %s96
    %s114 = sphi 0, %s114
    %s116 = sphi 0, %s114
    %s117 = sphi 0, %s116
    %s131 = sphi 0, %s117
    %s135 = sphi 0, %s135
    %s137 = sphi 0, %s135
    %s138 = sphi 0, %s137
    %s152 = sphi 0, %s138
    %s158 = sphi 0, %s160
    %s161 = sphi 0, %s158
    %s162 = sphi 0, %s161
    %s178 = sphi 0, %s162
  $region4: #{filblock_forward.1} parent=0 // loop_header_branch
    %15 = sbr.rel (%p13) target = $region8
  $region5: #{filblock_forward.1} parent=0 // loop_body
    %s17 = ssub.s32 %s12, 1
    %s18 = ssub.s32 %s12, 2
    %s19 = sadd.s32 %s12, 1
    %s20 = ssub.s32 %s12, %s19
    %p21 = scmp.eq.s32.totalorder %s20, 0
    %s23 = sadd.s32 %s22, 1
    %s24 = scalar_select %p21, %s22, %s23
    %p27 = pneg %p21
    %p28 = scmp.eq.s32.totalorder %s12, 1
    %p29 = por %p27, %p28
    %p30 = scmp.ne.s32.totalorder %s22, %s25
    %p31 = scmp.eq.s32.totalorder %s12, 0
    %p32 = por %p30, %p31
    %p33 = scmp.ne.s32.totalorder %s22, %s25
    %p34 = scmp.eq.s32.totalorder %s17, 1
    %p35 = por %p33, %p34
    %p36 = scmp.ne.s32.totalorder %s25, %s26
    %p37 = scmp.eq.s32.totalorder %s17, 0
    %p38 = por %p36, %p37
    %p39 = scmp.ne.s32.totalorder %s25, %s26
    %p40 = scmp.eq.s32.totalorder %s18, 1
    %p41 = por %p39, %p40
    %p43 = scmp.ne.s32.totalorder %s26, %s42
    %p44 = scmp.eq.s32.totalorder %s18, 0
    %p45 = por %p43, %p44
    %s46 = ssub.s32 %s12, %s19
    %p47 = scmp.eq.s32.totalorder %s46, 0
    %s49 = sadd.s32 %s48, 1
    %s50 = scalar_select %p47, %s48, %s49
    %p53 = pneg %p47
    %p54 = scmp.eq.s32.totalorder %s12, 1
    %p55 = por %p53, %p54
    %p56 = scmp.ne.s32.totalorder %s48, %s51
    %p57 = scmp.eq.s32.totalorder %s12, 0
    %p58 = por %p56, %p57
    %p59 = scmp.ne.s32.totalorder %s48, %s51
    %p60 = scmp.eq.s32.totalorder %s17, 1
    %p61 = por %p59, %p60
    %p62 = scmp.ne.s32.totalorder %s51, %s52
    %p63 = scmp.eq.s32.totalorder %s17, 0
    %p64 = por %p62, %p63
    %p65 = scmp.ne.s32.totalorder %s51, %s52
    %p66 = scmp.eq.s32.totalorder %s18, 1
    %p67 = por %p65, %p66
    %p69 = scmp.ne.s32.totalorder %s52, %s68
    %p70 = scmp.eq.s32.totalorder %s18, 0
    %p71 = por %p69, %p70
    %s73 = sadd.s32 %s72, 1
    %p76 = scmp.eq.s32.totalorder %s12, 1
    %p77 = scmp.ne.s32.totalorder %s72, %s74
    %p78 = scmp.eq.s32.totalorder %s12, 0
    %p79 = por %p77, %p78
    %p80 = scmp.ne.s32.totalorder %s72, %s74
    %p81 = scmp.eq.s32.totalorder %s17, 1
    %p82 = por %p80, %p81
    %p83 = scmp.ne.s32.totalorder %s74, %s75
    %p84 = scmp.eq.s32.totalorder %s17, 0
    %p85 = por %p83, %p84
    %p86 = scmp.ne.s32.totalorder %s74, %s75
    %p87 = scmp.eq.s32.totalorder %s18, 1
    %p88 = por %p86, %p87
    %p90 = scmp.ne.s32.totalorder %s75, %s89
    %p91 = scmp.eq.s32.totalorder %s18, 0
    %p92 = por %p90, %p91
    %s94 = sadd.s32 %s93, 1
    %p97 = scmp.eq.s32.totalorder %s12, 1
    %p98 = scmp.ne.s32.totalorder %s93, %s95
    %p99 = scmp.eq.s32.totalorder %s12, 0
    %p100 = por %p98, %p99
    %p101 = scmp.ne.s32.totalorder %s93, %s95
    %p102 = scmp.eq.s32.totalorder %s17, 1
    %p103 = por %p101, %p102
    %p104 = scmp.ne.s32.totalorder %s95, %s96
    %p105 = scmp.eq.s32.totalorder %s17, 0
    %p106 = por %p104, %p105
    %p107 = scmp.ne.s32.totalorder %s95, %s96
    %p108 = scmp.eq.s32.totalorder %s18, 1
    %p109 = por %p107, %p108
    %p111 = scmp.ne.s32.totalorder %s96, %s110
    %p112 = scmp.eq.s32.totalorder %s18, 0
    %p113 = por %p111, %p112
    %s115 = sadd.s32 %s114, 1
    %p118 = scmp.eq.s32.totalorder %s12, 1
    %p119 = scmp.ne.s32.totalorder %s114, %s116
    %p120 = scmp.eq.s32.totalorder %s12, 0
    %p121 = por %p119, %p120
    %p122 = scmp.ne.s32.totalorder %s114, %s116
    %p123 = scmp.eq.s32.totalorder %s17, 1
    %p124 = por %p122, %p123
    %p125 = scmp.ne.s32.totalorder %s116, %s117
    %p126 = scmp.eq.s32.totalorder %s17, 0
    %p127 = por %p125, %p126
    %p128 = scmp.ne.s32.totalorder %s116, %s117
    %p129 = scmp.eq.s32.totalorder %s18, 1
    %p130 = por %p128, %p129
    %p132 = scmp.ne.s32.totalorder %s117, %s131
    %p133 = scmp.eq.s32.totalorder %s18, 0
    %p134 = por %p132, %p133
    %s136 = sadd.s32 %s135, 1
    %p139 = scmp.eq.s32.totalorder %s12, 1
    %p140 = scmp.ne.s32.totalorder %s135, %s137
    %p141 = scmp.eq.s32.totalorder %s12, 0
    %p142 = por %p140, %p141
    %p143 = scmp.ne.s32.totalorder %s135, %s137
    %p144 = scmp.eq.s32.totalorder %s17, 1
    %p145 = por %p143, %p144
    %p146 = scmp.ne.s32.totalorder %s137, %s138
    %p147 = scmp.eq.s32.totalorder %s17, 0
    %p148 = por %p146, %p147
    %p149 = scmp.ne.s32.totalorder %s137, %s138
    %p150 = scmp.eq.s32.totalorder %s18, 1
    %p151 = por %p149, %p150
    %p153 = scmp.ne.s32.totalorder %s138, %s152
    %p154 = scmp.eq.s32.totalorder %s18, 0
    %p155 = por %p153, %p154
    %s156 = ssub.s32 %s12, %s19
    %p157 = scmp.eq.s32.totalorder %s156, 0
    %s159 = sadd.s32 %s158, 1
    %s160 = scalar_select %p157, %s158, %s159
    %p163 = pneg %p157
    %p164 = scmp.eq.s32.totalorder %s12, 1
    %p165 = por %p163, %p164
    %p166 = scmp.ne.s32.totalorder %s158, %s161
    %p167 = scmp.eq.s32.totalorder %s12, 0
    %p168 = por %p166, %p167
    %p169 = scmp.ne.s32.totalorder %s158, %s161
    %p170 = scmp.eq.s32.totalorder %s17, 1
    %p171 = por %p169, %p170
    %p172 = scmp.ne.s32.totalorder %s161, %s162
    %p173 = scmp.eq.s32.totalorder %s17, 0
    %p174 = por %p172, %p173
    %p175 = scmp.ne.s32.totalorder %s161, %s162
    %p176 = scmp.eq.s32.totalorder %s18, 1
    %p177 = por %p175, %p176
    %p179 = scmp.ne.s32.totalorder %s162, %s178
    %p180 = scmp.eq.s32.totalorder %s18, 0
    %p181 = por %p179, %p180
    %p182 = scmp.le.s32.totalorder 1, %s12
    %p183 = scmp.lt.s32.totalorder %s12, 3
    %p184 = pnand %p182, %p183
    %p185 = pneg %p184
    // Predicated region
    $region9: #{filblock_forward.1} parent=5 // pred_check
      _
    $region10: #{filblock_forward.1} parent=5 // pred_check_branch
      %187 = sbr.rel (%p184) target = $region12
    $region11: #{filblock_forward.1} parent=5 // pred_region
      %s188 = ssub.s32 %s12, 1
      // Predicated region
      $region13: #{filblock_forward.1} parent=11 // pred_check
        %p189 = pneg %p85
      $region14: #{filblock_forward.1} parent=11 // pred_check_branch
        %191 = sbr.rel (%p189) target = $region16
      $region15: #{filblock_forward.1} parent=11 // pred_region
        _
      $region16: #{filblock_forward.1} parent=11 // pred_fallthru
        _
      // Predicated region
      $region17: #{filblock_forward.1} parent=11 // pred_check
        %p192 = pneg %p106
      $region18: #{filblock_forward.1} parent=11 // pred_check_branch
        %194 = sbr.rel (%p192) target = $region20
      $region19: #{filblock_forward.1} parent=11 // pred_region
        _
      $region20: #{filblock_forward.1} parent=11 // pred_fallthru
        _
      // Predicated region
      $region21: #{filblock_forward.1} parent=11 // pred_check
        %p195 = pneg %p127
      $region22: #{filblock_forward.1} parent=11 // pred_check_branch
        %197 = sbr.rel (%p195) target = $region24
      $region23: #{filblock_forward.1} parent=11 // pred_region
        _
      $region24: #{filblock_forward.1} parent=11 // pred_fallthru
        _
      // Predicated region
      $region25: #{filblock_forward.1} parent=11 // pred_check
        %p198 = pneg %p148
      $region26: #{filblock_forward.1} parent=11 // pred_check_branch
        %200 = sbr.rel (%p198) target = $region28
      $region27: #{filblock_forward.1} parent=11 // pred_region
        _
      $region28: #{filblock_forward.1} parent=11 // pred_fallthru
        _
    $region12: #{filblock_forward.1} parent=5 // pred_fallthru
      _
    %p201 = scmp.lt.s32.totalorder %s12, 2
    // Predicated region
    $region29: #{filblock_forward.1} parent=5 // pred_check
      %p202 = pneg %p201
    $region30: #{filblock_forward.1} parent=5 // pred_check_branch
      %204 = sbr.rel (%p202) target = $region32
    $region31: #{filblock_forward.1} parent=5 // pred_region
      // Predicated region
      $region33: #{filblock_forward.1} parent=31 // pred_check
        %p205 = pneg %p32
      $region34: #{filblock_forward.1} parent=31 // pred_check_branch
        %207 = sbr.rel (%p205) target = $region36
      $region35: #{filblock_forward.1} parent=31 // pred_region
        %p208 = scmp.lt.s32.totalorder %s12, 1
        %s209 = scalar_select %p208, %s12, 1
        %s210 = smul.addr %s209, 8
        %s211 = smul.addr %s210, 4
        %s212 = scalar_lea.vmem %s0, %s211
      $region36: #{filblock_forward.1} parent=31 // pred_fallthru
        _
      // Predicated region
      $region37: #{filblock_forward.1} parent=31 // pred_check
        %p213 = pneg %p58
      $region38: #{filblock_forward.1} parent=31 // pred_check_branch
        %215 = sbr.rel (%p213) target = $region40
      $region39: #{filblock_forward.1} parent=31 // pred_region
        %p216 = scmp.lt.s32.totalorder %s12, 1
        %s217 = scalar_select %p216, %s12, 1
        %s218 = smul.addr %s217, 8
        %s219 = smul.addr %s218, 4
        %s220 = scalar_lea.vmem %s1, %s219
      $region40: #{filblock_forward.1} parent=31 // pred_fallthru
        _
    $region32: #{filblock_forward.1} parent=5 // pred_fallthru
      _
    %p221 = scmp.le.s32.totalorder 1, %s12
    %p222 = scmp.lt.s32.totalorder %s12, 3
    %p223 = pnand %p221, %p222
    %p224 = pneg %p223
    // Predicated region
    $region41: #{filblock_forward.1} parent=5 // pred_check
      _
    $region42: #{filblock_forward.1} parent=5 // pred_check_branch
      %226 = sbr.rel (%p223) target = $region44
    $region43: #{filblock_forward.1} parent=5 // pred_region
      %s227 = ssub.s32 %s12, 1
      %p228 = scmp.lt.s32.totalorder %s17, 1
      %s229 = scalar_select %p228, %s17, 1
      %s230 = smul.addr %s229, 8
      %s231 = smul.addr %s230, 4
      %s232 = scalar_lea.vmem %s0, %s231
      %p233 = pneg %p38
      %p234 = pneg %p35
      %p235 = scmp.lt.s32.totalorder %s17, 1
      %s236 = scalar_select %p235, %s17, 1
      %s237 = smul.addr %s236, 8
      %s238 = smul.addr %s237, 4
      %s239 = scalar_lea.vmem %s1, %s238
      %p240 = pneg %p64
      %p241 = pneg %p61
      %p242 = pneg %p85
      %p243 = pneg %p82
      %p244 = pneg %p106
      %p245 = pneg %p103
      %p246 = pneg %p127
      %p247 = pneg %p124
      %p248 = pneg %p148
      %p249 = pneg %p145
      %p250 = pneg %p174
      %p251 = pneg %p171
      %p252 = scmp.lt.s32.totalorder %s17, 1
      %s253 = scalar_select %p252, %s17, 1
      %s254 = smul.addr %s253, 8
      %s255 = smul.addr %s254, 8
      %s256 = scalar_lea.vmem %s6, %s255
      %p257 = scmp.lt.s32.totalorder %s17, 1
      %s258 = scalar_select %p257, %s17, 1
      %s259 = smul.addr %s258, 8
      %s260 = smul.addr %s259, 4
      %s261 = scalar_lea.vmem %s0, %s260
      %p262 = scmp.lt.s32.totalorder %s17, 1
      %s263 = scalar_select %p262, %s17, 1
      %s264 = smul.addr %s263, 8
      %s265 = smul.addr %s264, 4
      %s266 = scalar_lea.vmem %s1, %s265
      %p267 = scmp.lt.s32.totalorder %s17, 1
      %s268 = scalar_select %p267, %s17, 1
      %s269 = smul.addr %s268, 8
      %s270 = smul.addr %s269, 8
      %s271 = scalar_lea.vmem %s6, %s270
      %v273 = vld [vmem:[%s2] sm:$0xf]
      %v274 = vld [vmem:[%s2 + $0x4] sm:$0xf]
      %v275 = vld [vmem:[%s2 + $0x8] sm:$0xf]
      %v276 = vld [vmem:[%s2 + $0xc] sm:$0xf]
      %v277 = vld [vmem:[%s261] sm:$0xf]
      %v278 = vld [vmem:[%s261 + $0x4] sm:$0xf]
      %v279 = vld [vmem:[%s261 + $0x8] sm:$0xf]
      %v280 = vld [vmem:[%s261 + $0xc] sm:$0xf]
      %v281 = vld [vmem:[%s261 + $0x10] sm:$0xf]
      %v282 = vld [vmem:[%s261 + $0x14] sm:$0xf]
      %v283 = vld [vmem:[%s261 + $0x18] sm:$0xf]
      %v284 = vld [vmem:[%s261 + $0x1c] sm:$0xf]
      %v289 = vunpack.c.l.b16 %v273
      %v290 = vunpack.c.l.b16 %v274
      %v291 = vunpack.c.l.b16 %v275
      %v292 = vunpack.c.l.b16 %v276
      %v293 = vpack.c.b16 %v290, %v289
      %v294 = vpack.c.b16 %v292, %v291
      %v303 = vunpack.c.l.b16 %v277
      %v304 = vunpack.c.l.b16 %v278
      %v305 = vunpack.c.l.b16 %v279
      %v306 = vunpack.c.l.b16 %v280
      %v307 = vunpack.c.l.b16 %v281
      %v308 = vunpack.c.l.b16 %v282
      %v309 = vunpack.c.l.b16 %v283
      %v310 = vunpack.c.l.b16 %v284
      %v311 = vpack.c.b16 %v304, %v303
      %v312 = vpack.c.b16 %v306, %v305
      %v313 = vpack.c.b16 %v308, %v307
      %v314 = vpack.c.b16 %v310, %v309
      %vm319 = vcmask 523264
      %v321 = vsel %vm319, %v293, 0
      %v324 = vsel %vm319, %v294, 0
      %326 = vmatprep.subr.bf16.mxu0 0
      %327 = vmatpush1.bf16.msra.mxu0 %v311
      %328 = vmatprep.subr.bf16.mxu0 0
      %329 = vmatpush1.bf16.msra.mxu0 %v312
      %330 = vmatprep.subr.bf16.mxu0 0
      %331 = vmatpush1.bf16.msra.mxu0 %v313
      %332 = vmatprep.subr.bf16.mxu0 0
      %333 = vmatpush1.bf16.msra.mxu0 %v314
      %334 = vmatprep.subr.bf16.mxu0 0
      %335 = vmatpush1.bf16.msra.mxu0 0
      %336 = vmatprep.subr.bf16.mxu0 0
      %337 = vmatpush1.bf16.msra.mxu0 0
      %338 = vmatprep.subr.bf16.mxu0 0
      %339 = vmatpush1.bf16.msra.mxu0 0
      %340 = vmatprep.subr.bf16.mxu0 0
      %341 = vmatpush1.bf16.msra.mxu0 0
      %342 = vmatprep.subr.bf16.mxu0 0
      %343 = vmatpush1.bf16.msra.mxu0 0
      %344 = vmatprep.subr.bf16.mxu0 0
      %345 = vmatpush1.bf16.msra.mxu0 0
      %346 = vmatprep.subr.bf16.mxu0 0
      %347 = vmatpush1.bf16.msra.mxu0 0
      %348 = vmatprep.subr.bf16.mxu0 0
      %349 = vmatpush1.bf16.msra.mxu0 0
      %350 = vmatprep.subr.bf16.mxu0 0
      %351 = vmatpush1.bf16.msra.mxu0 0
      %352 = vmatprep.subr.bf16.mxu0 0
      %353 = vmatpush1.bf16.msra.mxu0 0
      %354 = vmatprep.subr.bf16.mxu0 0
      %355 = vmatpush1.bf16.msra.mxu0 0
      %356 = vmatprep.subr.bf16.mxu0 0
      %357 = vmatpush1.bf16.msra.mxu0 0
      %358 = vmatprep.mubr.bf16.mxu0 0
      %359 = vmatmul.mubr.bf16.gmra.mrb[0].mxu0 %v321
      %v360 = vpop.f32.mrb[0].mxu0
      %v361 = vadd.f32 0.0, %v360
      %v362 = vpop.f32.mrb[0].mxu0
      %v363 = vpop.f32.mrb[0].mxu0
      %v364 = vadd.f32 0.0, %v363
      %v365 = vpop.f32.mrb[0].mxu0
      %366 = vmatprep.mubr.bf16.mxu0 0
      %367 = vmatmul.mubr.bf16.gmra.mrb[0].mxu0 %v324
      %v368 = vpop.f32.mrb[0].mxu0
      %v369 = vadd.f32 0.0, %v368
      %v370 = vpop.f32.mrb[0].mxu0
      %v371 = vpop.f32.mrb[0].mxu0
      %v372 = vadd.f32 0.0, %v371
      %v373 = vpop.f32.mrb[0].mxu0
      %374 = vdwg.mxu0
      %v375 = vld [vmem:[%s3] sm:$0xf]
      %v376 = vld [vmem:[%s3 + $0x4] sm:$0xf]
      %v377 = vld [vmem:[%s3 + $0x8] sm:$0xf]
      %v378 = vld [vmem:[%s3 + $0xc] sm:$0xf]
      %v379 = vld [vmem:[%s266] sm:$0xf]
      %v380 = vld [vmem:[%s266 + $0x4] sm:$0xf]
      %v381 = vld [vmem:[%s266 + $0x8] sm:$0xf]
      %v382 = vld [vmem:[%s266 + $0xc] sm:$0xf]
      %v383 = vld [vmem:[%s266 + $0x10] sm:$0xf]
      %v384 = vld [vmem:[%s266 + $0x14] sm:$0xf]
      %v385 = vld [vmem:[%s266 + $0x18] sm:$0xf]
      %v386 = vld [vmem:[%s266 + $0x1c] sm:$0xf]
      %v391 = vunpack.c.l.b16 %v375
      %v392 = vunpack.c.l.b16 %v376
      %v393 = vunpack.c.l.b16 %v377
      %v394 = vunpack.c.l.b16 %v378
      %v395 = vpack.c.b16 %v392, %v391
      %v396 = vpack.c.b16 %v394, %v393
      %v405 = vunpack.c.l.b16 %v379
      %v406 = vunpack.c.l.b16 %v380
      %v407 = vunpack.c.l.b16 %v381
      %v408 = vunpack.c.l.b16 %v382
      %v409 = vunpack.c.l.b16 %v383
      %v410 = vunpack.c.l.b16 %v384
      %v411 = vunpack.c.l.b16 %v385
      %v412 = vunpack.c.l.b16 %v386
      %v413 = vpack.c.b16 %v406, %v405
      %v414 = vpack.c.b16 %v408, %v407
      %v415 = vpack.c.b16 %v410, %v409
      %v416 = vpack.c.b16 %v412, %v411
      %v422 = vsel %vm319, %v395, 0
      %v425 = vsel %vm319, %v396, 0
      %427 = vmatprep.subr.bf16.mxu0 0
      %428 = vmatpush1.bf16.msra.mxu0 %v413
      %429 = vmatprep.subr.bf16.mxu0 0
      %430 = vmatpush1.bf16.msra.mxu0 %v414
      %431 = vmatprep.subr.bf16.mxu0 0
      %432 = vmatpush1.bf16.msra.mxu0 %v415
      %433 = vmatprep.subr.bf16.mxu0 0
      %434 = vmatpush1.bf16.msra.mxu0 %v416
      %435 = vmatprep.subr.bf16.mxu0 0
      %436 = vmatpush1.bf16.msra.mxu0 0
      %437 = vmatprep.subr.bf16.mxu0 0
      %438 = vmatpush1.bf16.msra.mxu0 0
      %439 = vmatprep.subr.bf16.mxu0 0
      %440 = vmatpush1.bf16.msra.mxu0 0
      %441 = vmatprep.subr.bf16.mxu0 0
      %442 = vmatpush1.bf16.msra.mxu0 0
      %443 = vmatprep.subr.bf16.mxu0 0
      %444 = vmatpush1.bf16.msra.mxu0 0
      %445 = vmatprep.subr.bf16.mxu0 0
      %446 = vmatpush1.bf16.msra.mxu0 0
      %447 = vmatprep.subr.bf16.mxu0 0
      %448 = vmatpush1.bf16.msra.mxu0 0
      %449 = vmatprep.subr.bf16.mxu0 0
      %450 = vmatpush1.bf16.msra.mxu0 0
      %451 = vmatprep.subr.bf16.mxu0 0
      %452 = vmatpush1.bf16.msra.mxu0 0
      %453 = vmatprep.subr.bf16.mxu0 0
      %454 = vmatpush1.bf16.msra.mxu0 0
      %455 = vmatprep.subr.bf16.mxu0 0
      %456 = vmatpush1.bf16.msra.mxu0 0
      %457 = vmatprep.subr.bf16.mxu0 0
      %458 = vmatpush1.bf16.msra.mxu0 0
      %459 = vmatprep.mubr.bf16.mxu0 0
      %460 = vmatmul.mubr.bf16.gmra.mrb[0].mxu0 %v422
      %v461 = vpop.f32.mrb[0].mxu0
      %v462 = vadd.f32 0.0, %v461
      %v463 = vpop.f32.mrb[0].mxu0
      %v464 = vpop.f32.mrb[0].mxu0
      %v465 = vadd.f32 0.0, %v464
      %v466 = vpop.f32.mrb[0].mxu0
      %467 = vmatprep.mubr.bf16.mxu0 0
      %468 = vmatmul.mubr.bf16.gmra.mrb[0].mxu0 %v425
      %v469 = vpop.f32.mrb[0].mxu0
      %v470 = vadd.f32 0.0, %v469
      %v471 = vpop.f32.mrb[0].mxu0
      %v472 = vpop.f32.mrb[0].mxu0
      %v473 = vadd.f32 0.0, %v472
      %v474 = vpop.f32.mrb[0].mxu0
      %475 = vdwg.mxu0
      %v476 = vld [vmem:[%s4] sm:$0xff]
      %v477 = vld [vmem:[%s4 + $0x8] sm:$0xff]
      %v478 = vld [vmem:[%s4 + $0x10] sm:$0xff]
      %v479 = vld [vmem:[%s4 + $0x18] sm:$0xff]
      %v480 = vld [vmem:[%s4 + $0x20] sm:$0xff]
      %v481 = vld [vmem:[%s4 + $0x28] sm:$0xff]
      %v482 = vld [vmem:[%s4 + $0x30] sm:$0xff]
      %v483 = vld [vmem:[%s4 + $0x38] sm:$0xff]
      %v484 = vld [vmem:[%s5] sm:$0xff]
      %v485 = vld [vmem:[%s5 + $0x8] sm:$0xff]
      %v486 = vld [vmem:[%s5 + $0x10] sm:$0xff]
      %v487 = vld [vmem:[%s5 + $0x18] sm:$0xff]
      %492 = vrot.lane.b32.xlu0 %v462, 16
      %v493 = vpop.permute.xlu0 %492
      %494 = vrot.lane.b32.xlu0 %v465, 16
      %v495 = vpop.permute.xlu0 %494
      %496 = vrot.lane.b32.xlu0 %v470, 16
      %v497 = vpop.permute.xlu0 %496
      %498 = vrot.lane.b32.xlu0 %v473, 16
      %v499 = vpop.permute.xlu0 %498
      %vm504 = vcmask 130048
      %v505 = vsel %vm504, %v361, %v493
      %v506 = vsel %vm504, %v364, %v495
      %v507 = vsel %vm504, %v369, %v497
      %v508 = vsel %vm504, %v372, %v499
      %510 = vset.pattern.permute.xlu0 0
      %511 = vperm.xlu0 %510, %v484
      %v512 = vpop.permute.xlu0 %511
      %515 = vset.pattern.permute.xlu0 0
      %516 = vperm.xlu0 %515, %v485
      %v517 = vpop.permute.xlu0 %516
      %520 = vset.pattern.permute.xlu0 0
      %521 = vperm.xlu0 %520, %v486
      %v522 = vpop.permute.xlu0 %521
      %525 = vset.pattern.permute.xlu0 0
      %526 = vperm.xlu0 %525, %v487
      %v527 = vpop.permute.xlu0 %526
      %vm529 = vcmask 261120
      %v531 = vsel %vm529, %v505, 0
      %v534 = vsel %vm529, %v506, 0
      %v537 = vsel %vm529, %v507, 0
      %v540 = vsel %vm529, %v508, 0
      %542 = vmatprep.subr.mxu0 %v477
      %543 = vmatpush1.msra.mxu0 %v476
      %544 = vmatprep.subr.mxu0 %v479
      %545 = vmatpush1.msra.mxu0 %v478
      %546 = vmatprep.subr.mxu0 %v481
      %547 = vmatpush1.msra.mxu0 %v480
      %548 = vmatprep.subr.mxu0 %v483
      %549 = vmatpush1.msra.mxu0 %v482
      %550 = vmatprep.subr.mxu0 0.0
      %551 = vmatpush1.msra.mxu0 0.0
      %552 = vmatprep.subr.mxu0 0.0
      %553 = vmatpush1.msra.mxu0 0.0
      %554 = vmatprep.subr.mxu0 0.0
      %555 = vmatpush1.msra.mxu0 0.0
      %556 = vmatprep.subr.mxu0 0.0
      %557 = vmatpush1.msra.mxu0 0.0
      %558 = vmatprep.subr.mxu0 0.0
      %559 = vmatpush1.msra.mxu0 0.0
      %560 = vmatprep.subr.mxu0 0.0
      %561 = vmatpush1.msra.mxu0 0.0
      %562 = vmatprep.subr.mxu0 0.0
      %563 = vmatpush1.msra.mxu0 0.0
      %564 = vmatprep.subr.mxu0 0.0
      %565 = vmatpush1.msra.mxu0 0.0
      %566 = vmatprep.subr.mxu0 0.0
      %567 = vmatpush1.msra.mxu0 0.0
      %568 = vmatprep.subr.mxu0 0.0
      %569 = vmatpush1.msra.mxu0 0.0
      %570 = vmatprep.subr.mxu0 0.0
      %571 = vmatpush1.msra.mxu0 0.0
      %572 = vmatprep.subr.mxu0 0.0
      %573 = vmatpush1.msra.mxu0 0.0
      %574 = vmatprep.subr.mxu0 0.0
      %575 = vmatpush1.msra.mxu0 0.0
      %576 = vmatprep.subr.mxu0 0.0
      %577 = vmatpush1.msra.mxu0 0.0
      %578 = vmatprep.subr.mxu0 0.0
      %579 = vmatpush1.msra.mxu0 0.0
      %580 = vmatprep.subr.mxu0 0.0
      %581 = vmatpush1.msra.mxu0 0.0
      %582 = vmatprep.subr.mxu0 0.0
      %583 = vmatpush1.msra.mxu0 0.0
      %584 = vmatprep.subr.mxu0 0.0
      %585 = vmatpush1.msra.mxu0 0.0
      %586 = vmatprep.subr.mxu0 0.0
      %587 = vmatpush1.msra.mxu0 0.0
      %588 = vmatprep.subr.mxu0 0.0
      %589 = vmatpush1.msra.mxu0 0.0
      %590 = vmatprep.subr.mxu0 0.0
      %591 = vmatpush1.msra.mxu0 0.0
      %592 = vmatprep.subr.mxu0 0.0
      %593 = vmatpush1.msra.mxu0 0.0
      %594 = vmatprep.subr.mxu0 0.0
      %595 = vmatpush1.msra.mxu0 0.0
      %596 = vmatprep.subr.mxu0 0.0
      %597 = vmatpush1.msra.mxu0 0.0
      %598 = vmatprep.subr.mxu0 0.0
      %599 = vmatpush1.msra.mxu0 0.0
      %600 = vmatprep.subr.mxu0 0.0
      %601 = vmatpush1.msra.mxu0 0.0
      %602 = vmatprep.subr.mxu0 0.0
      %603 = vmatpush1.msra.mxu0 0.0
      %604 = vmatprep.subr.mxu0 0.0
      %605 = vmatpush1.msra.mxu0 0.0
      %606 = vmatprep.mubr.f32.mxu0 0.0
      %607 = vmatmul.mubr.f32.gmra.mrb[0].mxu0 %v531
      %v608 = vpop.f32.mrb[0].mxu0
      %v609 = vadd.f32 %v512, %v608
      %v610 = vpop.f32.mrb[0].mxu0
      %v611 = vadd.f32 %v512, %v610
      %612 = vmatprep.mubr.f32.mxu0 0.0
      %613 = vmatmul.mubr.f32.gmra.mrb[0].mxu0 %v534
      %v614 = vpop.f32.mrb[0].mxu0
      %v615 = vadd.f32 %v517, %v614
      %v616 = vpop.f32.mrb[0].mxu0
      %v617 = vadd.f32 %v517, %v616
      %618 = vmatprep.mubr.f32.mxu0 0.0
      %619 = vmatmul.mubr.f32.gmra.mrb[0].mxu0 %v537
      %v620 = vpop.f32.mrb[0].mxu0
      %v621 = vadd.f32 %v522, %v620
      %v622 = vpop.f32.mrb[0].mxu0
      %v623 = vadd.f32 %v522, %v622
      %624 = vmatprep.mubr.f32.mxu0 0.0
      %625 = vmatmul.mubr.f32.gmra.mrb[0].mxu0 %v540
      %v626 = vpop.f32.mrb[0].mxu0
      %v627 = vadd.f32 %v527, %v626
      %v628 = vpop.f32.mrb[0].mxu0
      %v629 = vadd.f32 %v527, %v628
      %630 = vdwg.mxu0
      %631 = vst [vmem:[%s271] sm:$0xff] %v609
      %632 = vst [vmem:[%s271 + $0x8] sm:$0xff] %v611
      %633 = vst [vmem:[%s271 + $0x10] sm:$0xff] %v615
      %634 = vst [vmem:[%s271 + $0x18] sm:$0xff] %v617
      %635 = vst [vmem:[%s271 + $0x20] sm:$0xff] %v621
      %636 = vst [vmem:[%s271 + $0x28] sm:$0xff] %v623
      %637 = vst [vmem:[%s271 + $0x30] sm:$0xff] %v627
      %638 = vst [vmem:[%s271 + $0x38] sm:$0xff] %v629
      %p639 = scmp.lt.s32.totalorder %s17, 1
      %s640 = scalar_select %p639, %s17, 1
      %s641 = smul.addr %s640, 8
      %s642 = smul.addr %s641, 8
      %s643 = scalar_lea.vmem %s6, %s642
      // Predicated region
      $region45: #{filblock_forward.1} parent=43 // pred_check
        %p644 = pneg %p171
      $region46: #{filblock_forward.1} parent=43 // pred_check_branch
        %646 = sbr.rel (%p644) target = $region48
      $region47: #{filblock_forward.1} parent=43 // pred_region
        _
      $region48: #{filblock_forward.1} parent=43 // pred_fallthru
        _
    $region44: #{filblock_forward.1} parent=5 // pred_fallthru
      _
    %p647 = scmp.le.s32.totalorder 2, %s12
    // Predicated region
    $region49: #{filblock_forward.1} parent=5 // pred_check
      %p648 = pneg %p647
    $region50: #{filblock_forward.1} parent=5 // pred_check_branch
      %650 = sbr.rel (%p648) target = $region52
    $region51: #{filblock_forward.1} parent=5 // pred_region
      %s651 = ssub.s32 %s12, 2
      // Predicated region
      $region53: #{filblock_forward.1} parent=51 // pred_check
        %p652 = pneg %p177
      $region54: #{filblock_forward.1} parent=51 // pred_check_branch
        %654 = sbr.rel (%p652) target = $region56
      $region55: #{filblock_forward.1} parent=51 // pred_region
        %p655 = scmp.lt.s32.totalorder %s18, 1
        %s656 = scalar_select %p655, %s18, 1
        %s657 = smul.addr %s656, 8
        %s658 = smul.addr %s657, 8
        %s659 = scalar_lea.vmem %s6, %s658
      $region56: #{filblock_forward.1} parent=51 // pred_fallthru
        _
    $region52: #{filblock_forward.1} parent=5 // pred_fallthru
      _
  $region6: #{filblock_forward.1} parent=0 // loop_footer
    %s16 = sadd.s32 1, %s12
  $region7: #{filblock_forward.1} parent=0 // loop_footer_branch
    %11 = sbr.rel target = $region3
  $region8: #{filblock_forward.1} parent=0 // loop_exit
    _

</llo_original>
